<compile_context>
chip_gen: v6e
topology: v6e:2x2x1
jax: 0.10.0
libtpu: 0.0.40
codegen_flags: <defaults>
</compile_context>

<pallas_src>
import functools

import jax
import jax.numpy as jnp
from jax.experimental import pallas as pl
from jax.experimental.pallas import tpu as pltpu


def _conv3x3_clamp_kernel(x_ref, w_ref, b_ref, o_ref, *, clamp_min):
    # x_ref: (TN, H, WP) f32 VMEM, lane-dense (WP multiple of 128); g images of
    #        width W are packed side by side along the lane axis.
    # w_ref: (9,) f32 SMEM (flattened 3x3 OIHW weights)
    # b_ref: (1,) f32 SMEM (bias with the "x - min" shift already folded in)
    # o_ref: (TN, H, WP) f32 VMEM (full-H block; invalid rows/cols stripped by wrapper)
    x = x_ref[...].astype(jnp.float32)

    # All 9 weights + bias are read from SMEM into scalars once.
    w = [w_ref[i] for i in range(9)]
    bias = b_ref[0]

    def row_taps(k):
        # t_k[.., i, c] = sum_l w[k,l] * x[.., i, c+l].
        # Constant-shift rolls wrap, but wrapped columns land only in each
        # image's seam columns (>= OW within that image) which are discarded.
        t = w[3 * k] * x
        t = t + w[3 * k + 1] * jnp.roll(x, -1, axis=-1)
        t = t + w[3 * k + 2] * jnp.roll(x, -2, axis=-1)
        return t

    # Row-by-row accumulation: only ~4 full-size slabs live at once
    # (x, acc, current row taps, its rolled copy).
    acc = row_taps(0) + bias
    acc = acc + jnp.roll(row_taps(1), -1, axis=-2)   # kernel row 1 aligned onto row r
    acc = acc + jnp.roll(row_taps(2), -2, axis=-2)   # kernel row 2 aligned onto row r

    # clamp(conv, min=-max): full-H lane-dense store (unmasked).
    o_ref[...] = jnp.maximum(acc, clamp_min).astype(o_ref.dtype)


def _conv3x3_clamp_jnp(x, w, b, shift, clamp_min):
    """Plain-jnp fast path for tiny shapes (e.g. the module's literal (1,1,3,3))."""
    n, _, h, wdim = x.shape
    oh, ow = h - 2, wdim - 2
    xs = x.reshape(n, h, wdim).astype(jnp.float32) + shift
    acc = jnp.full((n, oh, ow), b.astype(jnp.float32)[0], dtype=jnp.float32)
    for k in range(3):
        for l in range(3):
            acc = acc + w[0, 0, k, l].astype(jnp.float32) * xs[:, k:k + oh, l:l + ow]
    return jnp.maximum(acc, clamp_min).reshape(n, 1, oh, ow).astype(x.dtype)


def conv2d_clamp(x, w, b, *, min_val=-0.75, max_val=-0.05,
                 batch_tile=None, use_pallas=None):
    """x: (N, 1, H, W); w: (1, 1, 3, 3); b: (1,). Valid conv, stride 1, then clamp."""
    n, c_in, h, wdim = x.shape
    c_out, c_in_w, kh, kw_ = w.shape
    assert (c_in, c_out, c_in_w, kh, kw_) == (1, 1, 1, 3, 3), \
        "kernel is specialized to Conv2d(1, 1, 3) as in ClampModel"
    oh, ow = h - kh + 1, wdim - kw_ + 1

    shift = -float(min_val)        # x - min == x + shift
    clamp_min = -float(max_val)    # clamp lower bound

    if use_pallas is None:
        # Tiny single-image shapes are pure launch/pad overhead for pallas_call.
        use_pallas = n * h * wdim >= 1024
    if not use_pallas:
        return _conv3x3_clamp_jnp(x, w, b, shift, clamp_min)

    # ---- Lane packing: g images side by side along the 128-lane axis. ----
    g = 1 if wdim >= 128 else max(1, 128 // wdim)
    slab_w = g * wdim
    wp = pl.cdiv(slab_w, 128) * 128

    xs = x.reshape(n, h, wdim).astype(jnp.float32)
    n_g = pl.cdiv(n, g) * g
    if n_g != n:                                   # at most g-1 extra images
        xs = jnp.pad(xs, ((0, n_g - n), (0, 0), (0, 0)))
    num_slabs = n_g // g
    xs = xs.reshape(num_slabs, g, h, wdim).transpose(0, 2, 1, 3)
    xs = xs.reshape(num_slabs, h, slab_w)
    if wp != slab_w:                               # only when 128 % W != 0
        xs = jnp.pad(xs, ((0, 0), (0, 0), (0, wp - slab_w)))

    # ---- Batch tile: multi-MiB grid steps within the smallest scoped-VMEM
    # default (v5e 16 MiB), counting ~10 live slabs: 2x double-buffered input,
    # 2x double-buffered output, ~4-6 in-kernel temporaries. ----
    per_slab_bytes = h * wp * 4
    if batch_tile is not None:
        tn = max(1, int(batch_tile))
    else:
        tn = max(1, (12 * 1024 * 1024) // (10 * per_slab_bytes))
        if num_slabs >= 4:
            # keep >= ~4 grid steps: megacore split on v7x + pipeline overlap.
            tn = min(tn, pl.cdiv(num_slabs, 4))
        tn = min(tn, num_slabs)
        if num_slabs % tn:
            # prefer a tile that divides the slab count over padding the batch.
            div = next((c for c in range(tn, max(tn // 2, 1) - 1, -1)
                        if num_slabs % c == 0), None)
            if div is not None:
                tn = div
    ns_pad = pl.cdiv(num_slabs, tn) * tn
    if ns_pad != num_slabs:
        xs = jnp.pad(xs, ((0, ns_pad - num_slabs), (0, 0), (0, 0)))

    w_flat = w.reshape(-1).astype(jnp.float32)
    # conv(x + shift) = conv(x) + shift * sum(w): fold the shift into the bias.
    b_eff = (b.astype(jnp.float32) + shift * jnp.sum(w_flat)).reshape(1)

    kernel = functools.partial(_conv3x3_clamp_kernel, clamp_min=clamp_min)
    out = pl.pallas_call(
        kernel,
        out_shape=jax.ShapeDtypeStruct((ns_pad, h, wp), jnp.float32),
        grid=(ns_pad // tn,),
        in_specs=[
            pl.BlockSpec((tn, h, wp), lambda i: (i, 0, 0)),           # packed slabs
            pl.BlockSpec(memory_space=pltpu.MemorySpace.SMEM),        # flat weights
            pl.BlockSpec(memory_space=pltpu.MemorySpace.SMEM),        # folded bias
        ],
        out_specs=pl.BlockSpec((tn, h, wp), lambda i: (i, 0, 0)),
        compiler_params=pltpu.CompilerParams(
            dimension_semantics=("parallel",)),                       # 2 TCs on v7x
    )(xs, w_flat, b_eff)

    # Strip lane padding, un-pack images from the lane axis, strip seam rows/cols.
    out = out[:num_slabs, :, :slab_w].reshape(num_slabs, h, g, wdim)
    out = out.transpose(0, 2, 1, 3).reshape(num_slabs * g, h, wdim)
    return out[:n, :oh, :ow].reshape(n, 1, oh, ow).astype(x.dtype)


def _reference(x, w, b, min_val=-0.75, max_val=-0.05):
    y = jax.lax.conv_general_dilated(
        (x - min_val).astype(jnp.float32), w.astype(jnp.float32),
        window_strides=(1, 1), padding="VALID",
        dimension_numbers=("NCHW", "OIHW", "NCHW"))
    y = y + b.reshape(1, -1, 1, 1)
    return jnp.maximum(y, -max_val)


if __name__ == "__main__":
    key = jax.random.PRNGKey(0)
    kx, kw, kb = jax.random.split(key, 3)

    # PyTorch-style uniform init, bound = 1/sqrt(fan_in) = 1/3 for Conv2d(1,1,3).
    bound = 1.0 / 3.0
    w = jax.random.uniform(kw, (1, 1, 3, 3), minval=-bound, maxval=bound,
                           dtype=jnp.float32)
    b = jax.random.uniform(kb, (1,), minval=-bound, maxval=bound, dtype=jnp.float32)

    # Batched shape consistent with the module (C=1): 32 images of 16x16 pack
    # 8 per 128-lane slab -> 4 slabs -> a 4-step pipelined, parallel grid.
    x_big = jax.random.normal(kx, (32, 1, 16, 16), dtype=jnp.float32)
    out_big = jax.block_until_ready(conv2d_clamp(x_big, w, b))
    ref_big = _reference(x_big, w, b)
    assert out_big.shape == (32, 1, 14, 14)
    assert jnp.allclose(out_big, ref_big, atol=1e-5, rtol=1e-5)

    # The module's literal input shape (1, 1, 3, 3): tiny-shape fast path.
    x_small = jax.random.normal(jax.random.PRNGKey(1), (1, 1, 3, 3),
                                dtype=jnp.float32)
    out_small = jax.block_until_ready(conv2d_clamp(x_small, w, b))
    ref_small = _reference(x_small, w, b)
    assert out_small.shape == (1, 1, 1, 1)
    assert jnp.allclose(out_small, ref_small, atol=1e-5, rtol=1e-5)

    print("KERNEL_OK")
</pallas_src>

<mosaic_0001>
module attributes {stable_mosaic.version = 11 : i64} {
  func.func @_conv3x3_clamp_kernel(%arg0: i32, %arg1: memref<1x16x128xf32, #tpu.memory_space<vmem>>, %arg2: memref<9xf32, #tpu.memory_space<smem>>, %arg3: memref<1xf32, #tpu.memory_space<smem>>, %arg4: memref<1x16x128xf32, #tpu.memory_space<vmem>>) attributes {dimension_semantics = [#tpu.dimension_semantics<parallel>], iteration_bounds = array<i64: 4>, scalar_prefetch = 0 : i64, scratch_operands = 0 : i64, tpu.core_type = #tpu.core_type<tc>, window_params = [{transform_indices = @transform_0, window_bounds = array<i64: 1, 16, 128>}, {transform_indices = @transform_1, window_bounds = array<i64: 9>}, {transform_indices = @transform_2, window_bounds = array<i64: 1>}, {transform_indices = @transform_3, window_bounds = array<i64: 1, 16, 128>}]} {
    %c0 = arith.constant 0 : index
    %c0_0 = arith.constant 0 : index
    %c0_1 = arith.constant 0 : index
    %0 = vector.load %arg1[%c0, %c0_0, %c0_1] : memref<1x16x128xf32, #tpu.memory_space<vmem>>, vector<1x16x128xf32>
    %c0_2 = arith.constant 0 : index
    %1 = memref.load %arg2[%c0_2] : memref<9xf32, #tpu.memory_space<smem>>
    %c1 = arith.constant 1 : index
    %2 = memref.load %arg2[%c1] : memref<9xf32, #tpu.memory_space<smem>>
    %c2 = arith.constant 2 : index
    %3 = memref.load %arg2[%c2] : memref<9xf32, #tpu.memory_space<smem>>
    %c3 = arith.constant 3 : index
    %4 = memref.load %arg2[%c3] : memref<9xf32, #tpu.memory_space<smem>>
    %c4 = arith.constant 4 : index
    %5 = memref.load %arg2[%c4] : memref<9xf32, #tpu.memory_space<smem>>
    %c5 = arith.constant 5 : index
    %6 = memref.load %arg2[%c5] : memref<9xf32, #tpu.memory_space<smem>>
    %c6 = arith.constant 6 : index
    %7 = memref.load %arg2[%c6] : memref<9xf32, #tpu.memory_space<smem>>
    %c7 = arith.constant 7 : index
    %8 = memref.load %arg2[%c7] : memref<9xf32, #tpu.memory_space<smem>>
    %c8 = arith.constant 8 : index
    %9 = memref.load %arg2[%c8] : memref<9xf32, #tpu.memory_space<smem>>
    %c0_3 = arith.constant 0 : index
    %10 = memref.load %arg3[%c0_3] : memref<1xf32, #tpu.memory_space<smem>>
    %11 = vector.broadcast %1 : f32 to vector<1x16x128xf32>
    %12 = arith.mulf %11, %0 : vector<1x16x128xf32>
    %13 = vector.extract_strided_slice %0 {offsets = [0, 0, 1], sizes = [1, 16, 127], strides = [1, 1, 1]} : vector<1x16x128xf32> to vector<1x16x127xf32>
    %14 = vector.extract_strided_slice %0 {offsets = [0, 0, 0], sizes = [1, 16, 1], strides = [1, 1, 1]} : vector<1x16x128xf32> to vector<1x16x1xf32>
    %15 = tpu.concatenate %13, %14 in 2 : vector<1x16x127xf32>, vector<1x16x1xf32> -> vector<1x16x128xf32>
    %16 = vector.broadcast %2 : f32 to vector<1x16x128xf32>
    %17 = arith.mulf %16, %15 : vector<1x16x128xf32>
    %18 = arith.addf %12, %17 : vector<1x16x128xf32>
    %19 = vector.extract_strided_slice %0 {offsets = [0, 0, 2], sizes = [1, 16, 126], strides = [1, 1, 1]} : vector<1x16x128xf32> to vector<1x16x126xf32>
    %20 = vector.extract_strided_slice %0 {offsets = [0, 0, 0], sizes = [1, 16, 2], strides = [1, 1, 1]} : vector<1x16x128xf32> to vector<1x16x2xf32>
    %21 = tpu.concatenate %19, %20 in 2 : vector<1x16x126xf32>, vector<1x16x2xf32> -> vector<1x16x128xf32>
    %22 = vector.broadcast %3 : f32 to vector<1x16x128xf32>
    %23 = arith.mulf %22, %21 : vector<1x16x128xf32>
    %24 = arith.addf %18, %23 : vector<1x16x128xf32>
    %25 = vector.broadcast %10 : f32 to vector<1x16x128xf32>
    %26 = arith.addf %24, %25 : vector<1x16x128xf32>
    %27 = vector.broadcast %4 : f32 to vector<1x16x128xf32>
    %28 = arith.mulf %27, %0 : vector<1x16x128xf32>
    %29 = vector.extract_strided_slice %0 {offsets = [0, 0, 1], sizes = [1, 16, 127], strides = [1, 1, 1]} : vector<1x16x128xf32> to vector<1x16x127xf32>
    %30 = vector.extract_strided_slice %0 {offsets = [0, 0, 0], sizes = [1, 16, 1], strides = [1, 1, 1]} : vector<1x16x128xf32> to vector<1x16x1xf32>
    %31 = tpu.concatenate %29, %30 in 2 : vector<1x16x127xf32>, vector<1x16x1xf32> -> vector<1x16x128xf32>
    %32 = vector.broadcast %5 : f32 to vector<1x16x128xf32>
    %33 = arith.mulf %32, %31 : vector<1x16x128xf32>
    %34 = arith.addf %28, %33 : vector<1x16x128xf32>
    %35 = vector.extract_strided_slice %0 {offsets = [0, 0, 2], sizes = [1, 16, 126], strides = [1, 1, 1]} : vector<1x16x128xf32> to vector<1x16x126xf32>
    %36 = vector.extract_strided_slice %0 {offsets = [0, 0, 0], sizes = [1, 16, 2], strides = [1, 1, 1]} : vector<1x16x128xf32> to vector<1x16x2xf32>
    %37 = tpu.concatenate %35, %36 in 2 : vector<1x16x126xf32>, vector<1x16x2xf32> -> vector<1x16x128xf32>
    %38 = vector.broadcast %6 : f32 to vector<1x16x128xf32>
    %39 = arith.mulf %38, %37 : vector<1x16x128xf32>
    %40 = arith.addf %34, %39 : vector<1x16x128xf32>
    %41 = vector.extract_strided_slice %40 {offsets = [0, 1, 0], sizes = [1, 15, 128], strides = [1, 1, 1]} : vector<1x16x128xf32> to vector<1x15x128xf32>
    %42 = vector.extract_strided_slice %40 {offsets = [0, 0, 0], sizes = [1, 1, 128], strides = [1, 1, 1]} : vector<1x16x128xf32> to vector<1x1x128xf32>
    %43 = tpu.concatenate %41, %42 in 1 : vector<1x15x128xf32>, vector<1x1x128xf32> -> vector<1x16x128xf32>
    %44 = arith.addf %26, %43 : vector<1x16x128xf32>
    %45 = vector.broadcast %7 : f32 to vector<1x16x128xf32>
    %46 = arith.mulf %45, %0 : vector<1x16x128xf32>
    %47 = vector.extract_strided_slice %0 {offsets = [0, 0, 1], sizes = [1, 16, 127], strides = [1, 1, 1]} : vector<1x16x128xf32> to vector<1x16x127xf32>
    %48 = vector.extract_strided_slice %0 {offsets = [0, 0, 0], sizes = [1, 16, 1], strides = [1, 1, 1]} : vector<1x16x128xf32> to vector<1x16x1xf32>
    %49 = tpu.concatenate %47, %48 in 2 : vector<1x16x127xf32>, vector<1x16x1xf32> -> vector<1x16x128xf32>
    %50 = vector.broadcast %8 : f32 to vector<1x16x128xf32>
    %51 = arith.mulf %50, %49 : vector<1x16x128xf32>
    %52 = arith.addf %46, %51 : vector<1x16x128xf32>
    %53 = vector.extract_strided_slice %0 {offsets = [0, 0, 2], sizes = [1, 16, 126], strides = [1, 1, 1]} : vector<1x16x128xf32> to vector<1x16x126xf32>
    %54 = vector.extract_strided_slice %0 {offsets = [0, 0, 0], sizes = [1, 16, 2], strides = [1, 1, 1]} : vector<1x16x128xf32> to vector<1x16x2xf32>
    %55 = tpu.concatenate %53, %54 in 2 : vector<1x16x126xf32>, vector<1x16x2xf32> -> vector<1x16x128xf32>
    %56 = vector.broadcast %9 : f32 to vector<1x16x128xf32>
    %57 = arith.mulf %56, %55 : vector<1x16x128xf32>
    %58 = arith.addf %52, %57 : vector<1x16x128xf32>
    %59 = vector.extract_strided_slice %58 {offsets = [0, 2, 0], sizes = [1, 14, 128], strides = [1, 1, 1]} : vector<1x16x128xf32> to vector<1x14x128xf32>
    %60 = vector.extract_strided_slice %58 {offsets = [0, 0, 0], sizes = [1, 2, 128], strides = [1, 1, 1]} : vector<1x16x128xf32> to vector<1x2x128xf32>
    %61 = tpu.concatenate %59, %60 in 1 : vector<1x14x128xf32>, vector<1x2x128xf32> -> vector<1x16x128xf32>
    %62 = arith.addf %44, %61 : vector<1x16x128xf32>
    %cst = arith.constant 5.000000e-02 : f32
    %63 = vector.broadcast %cst : f32 to vector<1x16x128xf32>
    %64 = arith.maximumf %62, %63 : vector<1x16x128xf32>
    %c0_4 = arith.constant 0 : index
    %c0_5 = arith.constant 0 : index
    %c0_6 = arith.constant 0 : index
    %65 = vector.load %arg4[%c0_4, %c0_5, %c0_6] : memref<1x16x128xf32, #tpu.memory_space<vmem>>, vector<1x16x128xf32>
    tpu.vector_store %arg4[%c0_4, %c0_5, %c0_6], %64 {strides = array<i32>} : memref<1x16x128xf32, #tpu.memory_space<vmem>>, vector<1x16x128xf32>,
    return
  }
  func.func @transform_0(%arg0: i32) -> (i32, i32, i32) {
    %c0_i32 = arith.constant 0 : i32
    %c0_i32_0 = arith.constant 0 : i32
    %c0_i32_1 = arith.constant 0 : i32
    return %arg0, %c0_i32, %c0_i32_0 : i32, i32, i32
  }
  func.func @transform_1(%arg0: i32) -> i32 {
    %c0_i32 = arith.constant 0 : i32
    %c0_i32_0 = arith.constant 0 : i32
    return %c0_i32 : i32
  }
  func.func @transform_2(%arg0: i32) -> i32 {
    %c0_i32 = arith.constant 0 : i32
    %c0_i32_0 = arith.constant 0 : i32
    return %c0_i32 : i32
  }
  func.func @transform_3(%arg0: i32) -> (i32, i32, i32) {
    %c0_i32 = arith.constant 0 : i32
    %c0_i32_0 = arith.constant 0 : i32
    %c0_i32_1 = arith.constant 0 : i32
    return %arg0, %c0_i32, %c0_i32_0 : i32, i32, i32
  }
}

</mosaic_0001>

<llo_original>
// kernel: tpu_custom_call.1
$region0: #{tpu_custom_call.1}
  #allocation0 [shape = 'u32[]', space=smem, size = 0x4, offset = 0x4, fixed_abs, tag = 'smem constant byte address 0x4 - core index']
  #allocation1 [shape = 'u32[144,128]{1,0:T(1,128)}', space=vmem, size = 0x12000, scoped, tag = 'internal scratch']
  #allocation2 [shape = 'f32[1]{0:T(128)S(6)}', space=smem, size = 0x200, scoped, tag = 'scoped memory for tpu_custom_call.1']
  %s0 = inlined_call_operand.hbm [shape: f32[4,16,128], index: 0, kind: input, shape index: {}]
  %s1 = inlined_call_operand.vmem [shape: f32[9], index: 1, kind: input, shape index: {}]
  %s2 = inlined_call_operand.<no memory space> [shape: f32[1], index: 2, kind: input, shape index: {}]
  %s3 = inlined_call_operand.hbm [shape: f32[4,16,128], index: 3, kind: output, shape index: {}]
  %s4 = sld [smem:[#allocation0]]
  $region53: #{tpu_custom_call.1} parent=0
    _
  %s6 = ssub.s32 1, %s4
  %s7 = scalar_select 0, %s6, %s4
  %8 = sst [smem:[#allocation2]] %s2
  $region1: #{tpu_custom_call.1} parent=0
    #allocation3 [shape = 'u8[16384]{0}', space=vmem, size = 0x4000, scoped, tag = 'input window, operand 0']
    #allocation4 [shape = 's32[2]{0}', space=sflag, size = 0x8, scoped, tag = 'scoped memory for tpu_custom_call.1']
    #allocation5 [shape = 's32[2]{0}', space=sflag, size = 0x8, scoped, tag = 'scoped memory for tpu_custom_call.1']
    #allocation6 [shape = 's32[2]{0}', space=sflag, size = 0x8, scoped, tag = 'scoped memory for tpu_custom_call.1']
    #allocation7 [shape = 'u8[512]{0}', space=smem, size = 0x200, scoped, tag = 'input window, operand 1, single buffered']
    #allocation8 [shape = 'u8[16384]{0}', space=vmem, size = 0x4000, scoped, tag = 'output window, operand 0']
    %9 = vsyncpa [#allocation4], 0
    %s10 = scalar_lea.sflag [#allocation4], 1
    %11 = vsyncpa %s10, 0
    %12 = vsyncpa [#allocation6], 0
    %13 = vsyncpa [#allocation5], 0
    %s14 = scalar_lea.sflag [#allocation5], 1
    %15 = vsyncpa %s14, 0
    loop: start=0, step=1, limit=6
    $region2: #{tpu_custom_call.1} parent=1 // loop_pre_header
      _
    $region3: #{tpu_custom_call.1} parent=1 // loop_header
      %s17 = sphi 0, %s21
      %p18 = scmp.ge.s32.totalorder %s17, 6
      %s27 = sphi 0, %s29
      %s30 = sphi 0, %s27
      %s31 = sphi 0, %s30
      %s47 = sphi 0, %s31
      %s51 = sphi 0, %s51
      %s53 = sphi 0, %s51
      %s54 = sphi 0, %s53
      %s68 = sphi 0, %s54
      %s72 = sphi 0, %s72
      %s74 = sphi 0, %s72
      %s75 = sphi 0, %s74
      %s89 = sphi 0, %s75
      %s95 = sphi 0, %s97
      %s98 = sphi 0, %s95
      %s99 = sphi 0, %s98
      %s115 = sphi 0, %s99
    $region4: #{tpu_custom_call.1} parent=1 // loop_header_branch
      %20 = sbr.rel (%p18) target = $region8
    $region5: #{tpu_custom_call.1} parent=1 // loop_body
      %s22 = ssub.s32 %s17, 1
      %s23 = ssub.s32 %s17, 2
      %s24 = sadd.s32 %s17, 1
      %s25 = ssub.s32 %s17, %s24
      %p26 = scmp.eq.s32.totalorder %s25, 0
      %s28 = sadd.s32 %s27, 1
      %s29 = scalar_select %p26, %s27, %s28
      %p32 = pneg %p26
      %p33 = scmp.eq.s32.totalorder %s17, 3
      %p34 = por %p32, %p33
      %p35 = scmp.ne.s32.totalorder %s27, %s30
      %p36 = scmp.eq.s32.totalorder %s17, 0
      %p37 = por %p35, %p36
      %p38 = scmp.ne.s32.totalorder %s27, %s30
      %p39 = scmp.eq.s32.totalorder %s22, 3
      %p40 = por %p38, %p39
      %p41 = scmp.ne.s32.totalorder %s30, %s31
      %p42 = scmp.eq.s32.totalorder %s22, 0
      %p43 = por %p41, %p42
      %p44 = scmp.ne.s32.totalorder %s30, %s31
      %p45 = scmp.eq.s32.totalorder %s23, 3
      %p46 = por %p44, %p45
      %p48 = scmp.ne.s32.totalorder %s31, %s47
      %p49 = scmp.eq.s32.totalorder %s23, 0
      %p50 = por %p48, %p49
      %s52 = sadd.s32 %s51, 1
      %p55 = scmp.eq.s32.totalorder %s17, 3
      %p56 = scmp.ne.s32.totalorder %s51, %s53
      %p57 = scmp.eq.s32.totalorder %s17, 0
      %p58 = por %p56, %p57
      %p59 = scmp.ne.s32.totalorder %s51, %s53
      %p60 = scmp.eq.s32.totalorder %s22, 3
      %p61 = por %p59, %p60
      %p62 = scmp.ne.s32.totalorder %s53, %s54
      %p63 = scmp.eq.s32.totalorder %s22, 0
      %p64 = por %p62, %p63
      %p65 = scmp.ne.s32.totalorder %s53, %s54
      %p66 = scmp.eq.s32.totalorder %s23, 3
      %p67 = por %p65, %p66
      %p69 = scmp.ne.s32.totalorder %s54, %s68
      %p70 = scmp.eq.s32.totalorder %s23, 0
      %p71 = por %p69, %p70
      %s73 = sadd.s32 %s72, 1
      %p76 = scmp.eq.s32.totalorder %s17, 3
      %p77 = scmp.ne.s32.totalorder %s72, %s74
      %p78 = scmp.eq.s32.totalorder %s17, 0
      %p79 = por %p77, %p78
      %p80 = scmp.ne.s32.totalorder %s72, %s74
      %p81 = scmp.eq.s32.totalorder %s22, 3
      %p82 = por %p80, %p81
      %p83 = scmp.ne.s32.totalorder %s74, %s75
      %p84 = scmp.eq.s32.totalorder %s22, 0
      %p85 = por %p83, %p84
      %p86 = scmp.ne.s32.totalorder %s74, %s75
      %p87 = scmp.eq.s32.totalorder %s23, 3
      %p88 = por %p86, %p87
      %p90 = scmp.ne.s32.totalorder %s75, %s89
      %p91 = scmp.eq.s32.totalorder %s23, 0
      %p92 = por %p90, %p91
      %s93 = ssub.s32 %s17, %s24
      %p94 = scmp.eq.s32.totalorder %s93, 0
      %s96 = sadd.s32 %s95, 1
      %s97 = scalar_select %p94, %s95, %s96
      %p100 = pneg %p94
      %p101 = scmp.eq.s32.totalorder %s17, 3
      %p102 = por %p100, %p101
      %p103 = scmp.ne.s32.totalorder %s95, %s98
      %p104 = scmp.eq.s32.totalorder %s17, 0
      %p105 = por %p103, %p104
      %p106 = scmp.ne.s32.totalorder %s95, %s98
      %p107 = scmp.eq.s32.totalorder %s22, 3
      %p108 = por %p106, %p107
      %p109 = scmp.ne.s32.totalorder %s98, %s99
      %p110 = scmp.eq.s32.totalorder %s22, 0
      %p111 = por %p109, %p110
      %p112 = scmp.ne.s32.totalorder %s98, %s99
      %p113 = scmp.eq.s32.totalorder %s23, 3
      %p114 = por %p112, %p113
      %p116 = scmp.ne.s32.totalorder %s99, %s115
      %p117 = scmp.eq.s32.totalorder %s23, 0
      %p118 = por %p116, %p117
      %p119 = scmp.le.s32.totalorder 1, %s17
      %p120 = scmp.lt.s32.totalorder %s17, 5
      %p121 = pnand %p119, %p120
      %p122 = pneg %p121
      // Predicated region
      $region9: #{tpu_custom_call.1} parent=5 // pred_check
        _
      $region10: #{tpu_custom_call.1} parent=5 // pred_check_branch
        %124 = sbr.rel (%p121) target = $region12
      $region11: #{tpu_custom_call.1} parent=5 // pred_region
        %s125 = ssub.s32 %s17, 1
        // Predicated region
        $region13: #{tpu_custom_call.1} parent=11 // pred_check
          %p126 = pneg %p64
        $region14: #{tpu_custom_call.1} parent=11 // pred_check_branch
          %128 = sbr.rel (%p126) target = $region16
        $region15: #{tpu_custom_call.1} parent=11 // pred_region
          %s130 = ssub.s32 16, 16
          %131 = vsyncadd [#allocation6], %s130
          %s133 = sshll.u32 %s1, 4
          %s134 = int_to_ptr.vmem [resolvable:$true] %s133
          %136 = dma.vmem_to_smem %s134, 16, [#allocation7], [#allocation6]
        $region16: #{tpu_custom_call.1} parent=11 // pred_fallthru
          _
        // Predicated region
        $region17: #{tpu_custom_call.1} parent=11 // pred_check
          %p137 = pneg %p85
        $region18: #{tpu_custom_call.1} parent=11 // pred_check_branch
          %139 = sbr.rel (%p137) target = $region20
        $region19: #{tpu_custom_call.1} parent=11 // pred_region
          _
        $region20: #{tpu_custom_call.1} parent=11 // pred_fallthru
          _
      $region12: #{tpu_custom_call.1} parent=5 // pred_fallthru
        _
      %p140 = scmp.lt.s32.totalorder %s17, 4
      // Predicated region
      $region21: #{tpu_custom_call.1} parent=5 // pred_check
        %p141 = pneg %p140
      $region22: #{tpu_custom_call.1} parent=5 // pred_check_branch
        %143 = sbr.rel (%p141) target = $region24
      $region23: #{tpu_custom_call.1} parent=5 // pred_region
        // Predicated region
        $region25: #{tpu_custom_call.1} parent=23 // pred_check
          %p144 = pneg %p37
        $region26: #{tpu_custom_call.1} parent=23 // pred_check_branch
          %146 = sbr.rel (%p144) target = $region28
        $region27: #{tpu_custom_call.1} parent=23 // pred_region
          %s147 = sand.u32 %s27, 1
          %s148 = scalar_lea.sflag [#allocation4], %s147
          %s149 = sand.u32 %s27, 1
          %s150 = smul.addr %s149, 16
          %s151 = scalar_lea.vmem [#allocation3], %s150
          %s153 = ssub.s32 256, 256
          %154 = vsyncadd %s148, %s153
          %s155 = smul.addr %s17, 2
          %s156 = smul.addr %s155, 128
          %s157 = scalar_lea.hbm %s0, %s156
          %s158 = sshll.u32 %s151, 4
          %s159 = int_to_ptr.vmem [resolvable:$true] %s158
          %164 = dma.hbm_to_vmem [thread:$0]  %s157, 256, %s159, %s148, 128, 128, 8
        $region28: #{tpu_custom_call.1} parent=23 // pred_fallthru
          _
      $region24: #{tpu_custom_call.1} parent=5 // pred_fallthru
        _
      %p165 = scmp.le.s32.totalorder 1, %s17
      %p166 = scmp.lt.s32.totalorder %s17, 5
      %p167 = pnand %p165, %p166
      %p168 = pneg %p167
      // Predicated region
      $region29: #{tpu_custom_call.1} parent=5 // pred_check
        _
      $region30: #{tpu_custom_call.1} parent=5 // pred_check_branch
        %170 = sbr.rel (%p167) target = $region32
      $region31: #{tpu_custom_call.1} parent=5 // pred_region
        %s171 = ssub.s32 %s17, 1
        %s172 = sand.u32 %s30, 1
        %s173 = scalar_lea.sflag [#allocation4], %s172
        %s174 = sand.u32 %s30, 1
        %s175 = smul.addr %s174, 16
        %s176 = scalar_lea.vmem [#allocation3], %s175
        // Predicated region
        $region33: #{tpu_custom_call.1} parent=31 // pred_check
          %p177 = pneg %p43
        $region34: #{tpu_custom_call.1} parent=31 // pred_check_branch
          %179 = sbr.rel (%p177) target = $region36
        $region35: #{tpu_custom_call.1} parent=31 // pred_region
          %180 = dma.done %s173, 256
        $region36: #{tpu_custom_call.1} parent=31 // pred_fallthru
          _
        // Predicated region
        $region37: #{tpu_custom_call.1} parent=31 // pred_check
          %p181 = pneg %p64
        $region38: #{tpu_custom_call.1} parent=31 // pred_check_branch
          %183 = sbr.rel (%p181) target = $region40
        $region39: #{tpu_custom_call.1} parent=31 // pred_region
          %184 = dma.done [#allocation6], 16
        $region40: #{tpu_custom_call.1} parent=31 // pred_fallthru
          _
        %185 = sfence
        %s186 = sand.u32 %s30, 1
        %s187 = scalar_lea.sflag [#allocation4], %s186
        %s188 = sand.u32 %s30, 1
        %s189 = smul.addr %s188, 16
        %s190 = scalar_lea.vmem [#allocation3], %s189
        %p191 = pneg %p43
        %p192 = pneg %p40
        %p193 = pneg %p64
        %p194 = pneg %p61
        %p195 = pneg %p85
        %p196 = pneg %p82
        %p197 = pneg %p111
        %p198 = pneg %p108
        %s199 = sand.u32 %s98, 1
        %s200 = scalar_lea.sflag [#allocation5], %s199
        %s201 = sand.u32 %s98, 1
        %s202 = smul.addr %s201, 16
        %s203 = scalar_lea.vmem [#allocation8], %s202
        %v204 = vld [vmem:[%s176] sm:$0xff]
        %v205 = vld [vmem:[%s176 + $0x8] sm:$0xff]
        %s206 = sld [smem:[#allocation7]]
        %s207 = sld [smem:[#allocation7 + $0x1]]
        %s208 = sld [smem:[#allocation7 + $0x2]]
        %s209 = sld [smem:[#allocation7 + $0x3]]
        %s210 = sld [smem:[#allocation7 + $0x4]]
        %s211 = sld [smem:[#allocation7 + $0x5]]
        %s212 = sld [smem:[#allocation7 + $0x6]]
        %s213 = sld [smem:[#allocation7 + $0x7]]
        %s214 = sld [smem:[#allocation7 + $0x8]]
        %s215 = sld [smem:[#allocation2]]
        %v216 = vstv %s206
        %v217 = vmul.f32 %v216, %v204
        %v218 = vmul.f32 %v216, %v205
        %221 = vrot.lane.b32.xlu0 %v204, 127
        %v222 = vpop.permute.xlu0 %221
        %223 = vrot.lane.b32.xlu0 %v205, 127
        %v224 = vpop.permute.xlu0 %223
        %v227 = vstv %s207
        %v228 = vmul.f32 %v227, %v222
        %v229 = vmul.f32 %v227, %v224
        %v230 = vadd.f32 %v217, %v228
        %v231 = vadd.f32 %v218, %v229
        %232 = vrot.lane.b32.xlu0 %v204, 126
        %v233 = vpop.permute.xlu0 %232
        %234 = vrot.lane.b32.xlu0 %v205, 126
        %v235 = vpop.permute.xlu0 %234
        %v238 = vstv %s208
        %v239 = vmul.f32 %v238, %v233
        %v240 = vmul.f32 %v238, %v235
        %v241 = vadd.f32 %v230, %v239
        %v242 = vadd.f32 %v231, %v240
        %v243 = vstv %s215
        %v244 = vadd.f32 %v241, %v243
        %v245 = vadd.f32 %v242, %v243
        %v246 = vstv %s209
        %v247 = vmul.f32 %v246, %v204
        %v248 = vmul.f32 %v246, %v205
        %v249 = vstv %s210
        %v250 = vmul.f32 %v249, %v222
        %v251 = vmul.f32 %v249, %v224
        %v252 = vadd.f32 %v247, %v250
        %v253 = vadd.f32 %v248, %v251
        %v254 = vstv %s211
        %v255 = vmul.f32 %v254, %v233
        %v256 = vmul.f32 %v254, %v235
        %v257 = vadd.f32 %v252, %v255
        %v258 = vadd.f32 %v253, %v256
        %vm261 = vcmask 1046528
        %v262 = vrot.slane %v257, 1
        %v263 = vrot.slane %v258, 1
        %v264 = vsel %vm261, %v262, %v263
        %v268 = vsel %vm261, %v263, %v262
        %v269 = vadd.f32 %v244, %v264
        %v270 = vadd.f32 %v245, %v268
        %v271 = vstv %s212
        %v272 = vmul.f32 %v271, %v204
        %v273 = vmul.f32 %v271, %v205
        %v274 = vstv %s213
        %v275 = vmul.f32 %v274, %v222
        %v276 = vmul.f32 %v274, %v224
        %v277 = vadd.f32 %v272, %v275
        %v278 = vadd.f32 %v273, %v276
        %v279 = vstv %s214
        %v280 = vmul.f32 %v279, %v233
        %v281 = vmul.f32 %v279, %v235
        %v282 = vadd.f32 %v277, %v280
        %v283 = vadd.f32 %v278, %v281
        %vm286 = vcmask 1045504
        %v287 = vrot.slane %v282, 2
        %v288 = vrot.slane %v283, 2
        %v289 = vsel %vm286, %v287, %v288
        %v293 = vsel %vm286, %v288, %v287
        %v294 = vadd.f32 %v269, %v289
        %v295 = vadd.f32 %v270, %v293
        %v296 = vmax.f32 %v294, 0.05
        %v297 = vmax.f32 %v295, 0.05
        %298 = vst [vmem:[%s203] sm:$0xff] %v296
        %299 = vst [vmem:[%s203 + $0x8] sm:$0xff] %v297
        %s300 = sand.u32 %s98, 1
        %s301 = scalar_lea.sflag [#allocation5], %s300
        %s302 = sand.u32 %s98, 1
        %s303 = smul.addr %s302, 16
        %s304 = scalar_lea.vmem [#allocation8], %s303
        // Predicated region
        $region41: #{tpu_custom_call.1} parent=31 // pred_check
          %p305 = pneg %p108
        $region42: #{tpu_custom_call.1} parent=31 // pred_check_branch
          %307 = sbr.rel (%p305) target = $region44
        $region43: #{tpu_custom_call.1} parent=31 // pred_region
          %s309 = ssub.s32 256, 256
          %310 = vsyncadd %s301, %s309
          %s311 = smul.addr %s22, 2
          %s312 = smul.addr %s311, 128
          %s313 = scalar_lea.hbm %s3, %s312
          %s314 = sshll.u32 %s304, 4
          %s315 = int_to_ptr.vmem [resolvable:$true] %s314
          %320 = dma.vmem_to_hbm [thread:$0]  %s315, 256, %s313, %s301, 128, 128, 8
        $region44: #{tpu_custom_call.1} parent=31 // pred_fallthru
          _
      $region32: #{tpu_custom_call.1} parent=5 // pred_fallthru
        _
      %p321 = scmp.le.s32.totalorder 2, %s17
      // Predicated region
      $region45: #{tpu_custom_call.1} parent=5 // pred_check
        %p322 = pneg %p321
      $region46: #{tpu_custom_call.1} parent=5 // pred_check_branch
        %324 = sbr.rel (%p322) target = $region48
      $region47: #{tpu_custom_call.1} parent=5 // pred_region
        %s325 = ssub.s32 %s17, 2
        // Predicated region
        $region49: #{tpu_custom_call.1} parent=47 // pred_check
          %p326 = pneg %p114
        $region50: #{tpu_custom_call.1} parent=47 // pred_check_branch
          %328 = sbr.rel (%p326) target = $region52
        $region51: #{tpu_custom_call.1} parent=47 // pred_region
          %s329 = sand.u32 %s99, 1
          %s330 = scalar_lea.sflag [#allocation5], %s329
          %s331 = sand.u32 %s99, 1
          %s332 = smul.addr %s331, 16
          %s333 = scalar_lea.vmem [#allocation8], %s332
          %334 = dma.done %s330, 256
        $region52: #{tpu_custom_call.1} parent=47 // pred_fallthru
          _
      $region48: #{tpu_custom_call.1} parent=5 // pred_fallthru
        _
    $region6: #{tpu_custom_call.1} parent=1 // loop_footer
      %s21 = sadd.s32 1, %s17
    $region7: #{tpu_custom_call.1} parent=1 // loop_footer_branch
      %16 = sbr.rel target = $region3
    $region8: #{tpu_custom_call.1} parent=1 // loop_exit
      _
    %335 = vsyncpa [#allocation4], 1
    %s336 = scalar_lea.sflag [#allocation4], 1
    %337 = vsyncpa %s336, 1
    %338 = vsyncpa [#allocation5], 1
    %s339 = scalar_lea.sflag [#allocation5], 1
    %340 = vsyncpa %s339, 1
    %341 = vsyncpa [#allocation6], 1
    %s342 = scalar_lea.sflag [#allocation6], 1
    %343 = vsyncpa %s342, 1

</llo_original>
